<compile_context>
chip_gen: v7x
topology: tpu7x:2x2x1
jax: 0.10.0
libtpu: 0.0.40
codegen_flags: <defaults>
</compile_context>

<pallas_src>
import jax
import jax.numpy as jnp
from jax.experimental import pallas as pl
from jax.experimental.pallas import tpu as pltpu


_CHUNK_MIN_BYTES = 4 * 1024 * 1024   # only split arrays >= 4 MiB
_MAX_CHUNKS = 8                       # at most this many concurrent DMAs/array


def _num_chunks(shape, nbytes):
    """Even chunk count along the leading dim for overlapping HBM->HBM DMAs."""
    if len(shape) == 0 or nbytes < _CHUNK_MIN_BYTES:
        return 1
    dim0 = shape[0]
    for nch in (_MAX_CHUNKS, 4, 2):
        if (nch <= dim0 and dim0 % nch == 0
                and nbytes // nch >= _CHUNK_MIN_BYTES // 4):
            return nch
    return 1


def _make_dma_copy_kernel(chunk_plan):
    """Build a kernel copying n HBM inputs to n HBM outputs via async DMA.

    chunk_plan: per-array (num_chunks, rows_per_chunk), all static Python ints.
    Kernel signature: (in_0..in_{n-1}, out_0..out_{n-1}, sem) with every array
    ref living in HBM (memory_space=pl.ANY) and `sem` a DMA semaphore array.
    """
    n = len(chunk_plan)

    def kernel(*refs):
        in_refs = refs[:n]
        out_refs = refs[n:2 * n]
        sem = refs[2 * n]
        copies = []
        si = 0
        # Start every DMA first (overlap across arrays and chunks), wait after.
        for a in range(n):
            nch, rows = chunk_plan[a]
            for c in range(nch):
                if nch == 1:
                    cp = pltpu.make_async_copy(in_refs[a], out_refs[a],
                                               sem.at[si])
                else:
                    sl = pl.ds(c * rows, rows)
                    cp = pltpu.make_async_copy(in_refs[a].at[sl],
                                               out_refs[a].at[sl],
                                               sem.at[si])
                cp.start()
                copies.append(cp)
                si += 1
        for cp in copies:
            cp.wait()

    return kernel


def _materialize_copies(arrays):
    """Copy each array into a distinct buffer with ONE fused pallas_call of
    direct HBM->HBM DMAs (no VMEM staging, no vector load/store pass)."""
    arrays = [jnp.asarray(a) for a in arrays]
    results = [None] * len(arrays)

    work_idx, work = [], []
    for i, a in enumerate(arrays):
        if a.size == 0:
            results[i] = a            # nothing to copy for empty arrays
        else:
            # 0-d scalars get a 1-D view for the DMA; reshaped back below.
            work_idx.append(i)
            work.append(a.reshape(1) if a.ndim == 0 else a)

    if work:
        chunk_plan = []
        for a in work:
            nbytes = a.size * a.dtype.itemsize
            nch = _num_chunks(a.shape, nbytes)
            rows = a.shape[0] // nch if nch > 1 else 0
            chunk_plan.append((nch, rows))
        total_sems = sum(p[0] for p in chunk_plan)

        outs = pl.pallas_call(
            _make_dma_copy_kernel(chunk_plan),
            out_shape=tuple(jax.ShapeDtypeStruct(a.shape, a.dtype)
                            for a in work),
            in_specs=[pl.BlockSpec(memory_space=pl.ANY) for _ in work],
            out_specs=tuple(pl.BlockSpec(memory_space=pl.ANY) for _ in work),
            scratch_shapes=[pltpu.SemaphoreType.DMA((total_sems,))],
        )(*work)
        if not isinstance(outs, (list, tuple)):
            outs = (outs,)
        for i, o in zip(work_idx, outs):
            results[i] = o.reshape(arrays[i].shape)

    return tuple(results)


def empty_forward(*args, **kwargs):
    """Faithful JAX equivalent of Empty.forward: a free pass-through.

    No kernel is launched and no bytes move: identity is the identity.
    """
    if len(args) == 1:
        return args[0]
    elif len(args) == 0:
        return None
    return args  # tuple, matching the PyTorch module


def empty_forward_materialized(*args, **kwargs):
    """Same semantics, but every output is a genuinely distinct buffer,
    produced by a single fused pallas_call of direct HBM->HBM DMA copies.

    Only use this when a distinct buffer is actually required; otherwise
    prefer `empty_forward` (zero cost).
    """
    if len(args) == 1:
        return _materialize_copies(args)[0]
    elif len(args) == 0:
        return None
    return _materialize_copies(args)


if __name__ == "__main__":
    key = jax.random.PRNGKey(0)
    k1, k2, k3, k4 = jax.random.split(key, 4)

    # Small NCHW tensor, consistent with how Empty is used as a no-op layer.
    x = jax.random.normal(k1, (2, 4, 16, 16), dtype=jnp.float32)

    # 1) Faithful forward: pure pass-through, zero cost.
    y = empty_forward(x)
    jax.block_until_ready(y)
    assert y is x

    assert empty_forward() is None

    z = jax.random.normal(k2, (8, 128), dtype=jnp.float32)
    outs = empty_forward(x, z)
    assert isinstance(outs, tuple) and len(outs) == 2
    assert outs[0] is x and outs[1] is z

    # 2) Materialized path: single-arg, whole-array HBM->HBM DMA.
    y2 = empty_forward_materialized(x)
    jax.block_until_ready(y2)
    assert y2.shape == x.shape and y2.dtype == x.dtype
    assert bool(jnp.all(y2 == x))

    #    Odd trailing dims are irrelevant to the DMA path (no block constraints).
    w = jax.random.normal(k3, (120, 96, 16), dtype=jnp.float32)
    w2 = empty_forward_materialized(w)
    jax.block_until_ready(w2)
    assert w2.shape == w.shape and bool(jnp.all(w2 == w))

    #    bf16 input.
    b = jax.random.normal(k3, (4, 32, 128), dtype=jnp.float32).astype(jnp.bfloat16)
    b2 = empty_forward_materialized(b)
    jax.block_until_ready(b2)
    assert b2.shape == b.shape and b2.dtype == jnp.bfloat16
    assert bool(jnp.all(b2 == b))

    #    4 MiB array exercises the multi-chunk (overlapping DMA) path.
    big = jax.random.normal(k4, (1024, 1024), dtype=jnp.float32)
    big2 = empty_forward_materialized(big)
    jax.block_until_ready(big2)
    assert big2.shape == big.shape and bool(jnp.all(big2 == big))

    #    Multi-arg materialized case: one fused pallas_call for all args.
    m = empty_forward_materialized(x, z, b)
    jax.block_until_ready(m)
    assert isinstance(m, tuple) and len(m) == 3
    assert bool(jnp.all(m[0] == x)) and bool(jnp.all(m[1] == z)) and bool(jnp.all(m[2] == b))

    print("KERNEL_OK")
</pallas_src>

<mosaic_0001>
module attributes {stable_mosaic.version = 11 : i64} {
  func.func @kernel(%arg0: memref<2x4x16x16xf32, #tpu.memory_space<any>>, %arg1: memref<2x4x16x16xf32, #tpu.memory_space<any>>, %arg2: memref<1x!tpu.dma_semaphore, #tpu.memory_space<semaphore_mem>>) attributes {dimension_semantics = [], scalar_prefetch = 0 : i64, scratch_operands = 1 : i64, tpu.core_type = #tpu.core_type<tc>} {
    %c0_i32 = arith.constant 0 : i32
    %0 = tpu.memref_slice %arg2[%c0_i32] : memref<1x!tpu.dma_semaphore, #tpu.memory_space<semaphore_mem>> -> memref<1x!tpu.dma_semaphore, #tpu.memory_space<semaphore_mem>>
    %1 = tpu.memref_squeeze %0 : memref<1x!tpu.dma_semaphore, #tpu.memory_space<semaphore_mem>> -> memref<!tpu.dma_semaphore, #tpu.memory_space<semaphore_mem>>
    tpu.enqueue_dma source(%arg0 : memref<2x4x16x16xf32, #tpu.memory_space<any>>) target(%arg1 : memref<2x4x16x16xf32, #tpu.memory_space<any>>) target_semaphore(%1 : memref<!tpu.dma_semaphore, #tpu.memory_space<semaphore_mem>>)
    %c0_i32_0 = arith.constant 0 : i32
    %2 = tpu.memref_slice %arg2[%c0_i32_0] : memref<1x!tpu.dma_semaphore, #tpu.memory_space<semaphore_mem>> -> memref<1x!tpu.dma_semaphore, #tpu.memory_space<semaphore_mem>>
    %3 = tpu.memref_squeeze %2 : memref<1x!tpu.dma_semaphore, #tpu.memory_space<semaphore_mem>> -> memref<!tpu.dma_semaphore, #tpu.memory_space<semaphore_mem>>
    tpu.wait_dma2 semaphore(%3 : memref<!tpu.dma_semaphore, #tpu.memory_space<semaphore_mem>>) src(%arg0 : memref<2x4x16x16xf32, #tpu.memory_space<any>>) dst(%arg1 : memref<2x4x16x16xf32, #tpu.memory_space<any>>)
    return
  }
}

</mosaic_0001>

<llo_original>
// kernel: tpu_custom_call.1
$region0: #{tpu_custom_call.1}
  #allocation0 [shape = 'u32[]', space=smem, size = 0x4, offset = 0x4, fixed_abs, tag = 'smem constant byte address 0x4 - core index']
  #allocation1 [shape = 'u32[144,128]{1,0:T(1,128)}', space=vmem, size = 0x12000, scoped, tag = 'internal scratch']
  #allocation2 [shape = 's32[1]{0}', space=sflag, size = 0x4, scoped, tag = 'scratch operand']
  #allocation3 [shape = 's32[]', space=sflag, size = 0x4, offset = 0, fixed_abs, tag = 'sflag constant byte address 0x0 - dummy sync flag']
  #allocation4 [shape = 'u32[0]{0}', space=smem, size = 0, offset = 0, fixed_abs, tag = 'smem constant byte address 0x0 - null']
  %s0 = inlined_call_operand.hbm [shape: f32[2,4,16,16], index: 0, kind: input, shape index: {}]
  %s1 = inlined_call_operand.hbm [shape: f32[2,4,16,16], index: 1, kind: output, shape index: {}]
  %s2 = sld [smem:[#allocation0]]
  $region2: #{tpu_custom_call.1} parent=0
    _
  %s4 = ssub.s32 1, %s2
  %s5 = scalar_select 0, %s4, %s2
  %s7 = sshll.u32 1, 14
  %s8 = sxor.u32 4294967295, %s7
  %s11 = sshll.u32 3, 24
  %s12 = sxor.u32 4294967295, %s11
  %s13 = sand.u32 0, %s12
  %s15 = sor.u32 %s13, 0
  %18 = dma.general %s0, 2048, %s1, [#allocation2], [#allocation3], [#allocation4], %s15, 0
  %s19 = smul.u32 2, 4
  %s20 = smul.u32 %s19, 16
  %s21 = smul.u32 %s20, 1
  %s22 = sshll.u32 %s21, 4
  %23 = dma.done [#allocation2], %s22
  %24 = vsyncmov [#allocation2]
  %s25 = vpop.sfrf %24
  %p26 = scmp.eq.s32.totalorder %s25, 0
  %p27 = pneg %p26
  %29 = shalt.err (%p27)

</llo_original>
